<compile_context>
chip_gen: v6e
topology: v6e:2x2x1
jax: 0.10.0
libtpu: 0.0.40
codegen_flags: <defaults>
</compile_context>

<pallas_src>
import functools

import jax
import jax.numpy as jnp
from jax.experimental import pallas as pl
from jax.experimental.pallas import tpu as pltpu

LANE = 128
SUBLANE = 8


def _round_up(a, m):
    return (a + m - 1) // m * m


def _sse_kernel(x_ref, t_ref, part_ref, *, block_rows, steps_per_part, rows,
                needs_mask):
    """Accumulates sum((x - t)^2) into a per-part (8, 128) vector accumulator."""
    p = pl.program_id(0)   # parallel partial-sum axis (megacore-friendly)
    s = pl.program_id(1)   # sequential reduction steps within a part

    @pl.when(s == 0)
    def _():
        part_ref[...] = jnp.zeros_like(part_ref)

    # Cast inside the kernel: accepts bf16 activations directly (halves HBM bytes),
    # no-op for f32 inputs.
    d = x_ref[...].astype(jnp.float32) - t_ref[...].astype(jnp.float32)
    dd = d * d

    if needs_mask:
        # Mask rows beyond the true row count (ragged last block / clamped
        # fully-out-of-range steps). Cheap VPU work vs. the HBM stream.
        gb = p * steps_per_part + s                                  # global block
        row = gb * block_rows + jax.lax.broadcasted_iota(jnp.int32, dd.shape, 0)
        dd = jnp.where(row < rows, dd, 0.0)

    # Reduce only along the leading (sublane-group) axis: pure VPU adds, no XLU.
    part_ref[...] += jnp.sum(dd.reshape(block_rows // SUBLANE, SUBLANE, LANE),
                             axis=0)


def mse_loss_pallas(x, target, *, block_rows=2048):
    """mean((x - target)**2) via a Pallas TPU streaming-reduction kernel."""
    assert x.shape == target.shape, "input and target must have the same shape"
    n = x.size

    flat_x = x.reshape(-1)
    flat_t = target.reshape(-1)

    rem = n % LANE
    if rem:
        # Rare ragged case (conv activations are normally multiples of 128).
        # Zero-padding both operands adds 0 to the SSE; `n` stays the true count.
        pad = LANE - rem
        flat_x = jnp.pad(flat_x, (0, pad))
        flat_t = jnp.pad(flat_t, (0, pad))

    rows = flat_x.size // LANE
    x2d = flat_x.reshape(rows, LANE)
    t2d = flat_t.reshape(rows, LANE)

    # Multi-MiB tiles for large inputs; clamp (to a multiple of 8) for small ones.
    block_rows = max(SUBLANE, _round_up(min(block_rows, rows), SUBLANE))
    total_blocks = pl.cdiv(rows, block_rows)

    # Two independent partial sums -> both TensorCores can stream on v7x.
    num_parts = 2 if total_blocks >= 2 else 1
    steps = pl.cdiv(total_blocks, num_parts)
    needs_mask = (num_parts * steps * block_rows) != rows
    last_block = total_blocks - 1

    kernel = functools.partial(
        _sse_kernel,
        block_rows=block_rows,
        steps_per_part=steps,
        rows=rows,
        needs_mask=needs_mask,
    )

    # Clamp fully-out-of-range block indices to the last valid block; their
    # contribution is zeroed by the in-kernel mask.
    in_spec = pl.BlockSpec(
        (block_rows, LANE),
        lambda p, s: (jnp.minimum(p * steps + s, last_block), 0),
    )

    partials = pl.pallas_call(
        kernel,
        out_shape=jax.ShapeDtypeStruct((num_parts, SUBLANE, LANE), jnp.float32),
        grid_spec=pltpu.PrefetchScalarGridSpec(
            num_scalar_prefetch=0,
            grid=(num_parts, steps),
            in_specs=[in_spec, in_spec],
            out_specs=pl.BlockSpec((None, SUBLANE, LANE), lambda p, s: (p, 0, 0)),
        ),
        compiler_params=pltpu.CompilerParams(
            dimension_semantics=("parallel", "arbitrary"),
            vmem_limit_bytes=32 * 1024 * 1024,
        ),
    )(x2d, t2d)

    # Tiny epilogue reduction (num_parts * 1024 f32) + divide by the true count.
    return jnp.sum(partials) / jnp.float32(n)


class ContentLoss:
    """JAX/Pallas mirror of the PyTorch ContentLoss module.

    Stores a detached target; __call__ computes self.loss = mse(input, target)
    and returns the input unchanged (pass-through), like the PyTorch module.
    """

    def __init__(self, target):
        self.target = jax.lax.stop_gradient(target)
        self.loss = None

    def __call__(self, x):
        self.loss = mse_loss_pallas(x, self.target)
        return x


if __name__ == "__main__":
    key = jax.random.PRNGKey(0)
    k1, k2, k3, k4, k5, k6 = jax.random.split(key, 6)

    # Small NCHW activation-like shapes: batch=2, channels=4, spatial=16x16.
    x = jax.random.normal(k1, (2, 4, 16, 16), dtype=jnp.float32)
    target = jax.random.normal(k2, (2, 4, 16, 16), dtype=jnp.float32)

    module = ContentLoss(target)
    out = module(x)
    out = jax.block_until_ready(out)
    loss = jax.block_until_ready(module.loss)

    ref_loss = jnp.mean((x - target) ** 2)
    assert jnp.allclose(loss, ref_loss, rtol=1e-5, atol=1e-6), (loss, ref_loss)
    assert jnp.array_equal(out, x)  # forward returns input unchanged

    # Extra check: multi-block grid with 2 parallel parts, ragged tail masking,
    # and a clamped out-of-range step (40 rows, block_rows=8 -> grid (2, 3)).
    x2 = jax.random.normal(k3, (1, 5, 32, 32), dtype=jnp.float32)   # 5120 elems
    t2 = jax.random.normal(k4, (1, 5, 32, 32), dtype=jnp.float32)
    l2 = jax.block_until_ready(mse_loss_pallas(x2, t2, block_rows=8))
    assert jnp.allclose(l2, jnp.mean((x2 - t2) ** 2), rtol=1e-5, atol=1e-6)

    # Extra check: element count not a multiple of 128 (padding fallback path).
    x3 = jax.random.normal(k5, (2, 3, 17, 19), dtype=jnp.float32)   # 1938 elems
    t3 = jax.random.normal(k6, (2, 3, 17, 19), dtype=jnp.float32)
    l3 = jax.block_until_ready(mse_loss_pallas(x3, t3))
    assert jnp.allclose(l3, jnp.mean((x3 - t3) ** 2), rtol=1e-5, atol=1e-6)

    print("KERNEL_OK")
</pallas_src>

<mosaic_0001>
module attributes {stable_mosaic.version = 11 : i64} {
  func.func @_sse_kernel(%arg0: i32, %arg1: i32, %arg2: memref<16x128xf32, #tpu.memory_space<vmem>>, %arg3: memref<16x128xf32, #tpu.memory_space<vmem>>, %arg4: memref<1x8x128xf32, #tpu.memory_space<vmem>>) attributes {dimension_semantics = [#tpu.dimension_semantics<parallel>, #tpu.dimension_semantics<arbitrary>], iteration_bounds = array<i64: 1, 1>, scalar_prefetch = 0 : i64, scratch_operands = 0 : i64, tpu.core_type = #tpu.core_type<tc>, window_params = [{transform_indices = @transform_0, window_bounds = array<i64: 16, 128>}, {transform_indices = @transform_1, window_bounds = array<i64: 16, 128>}, {transform_indices = @transform_2, window_bounds = array<i64: 1, 8, 128>}]} {
    %c0_i32 = arith.constant 0 : i32
    %0 = arith.cmpi eq, %arg1, %c0_i32 : i32
    %1 = arith.extui %0 : i1 to i32
    %c0_i32_0 = arith.constant 0 : i32
    %2 = arith.cmpi ne, %1, %c0_i32_0 : i32
    scf.if %2 {
      %cst_10 = arith.constant 0.000000e+00 : f32
      %15 = vector.broadcast %cst_10 : f32 to vector<8x128xf32>
      %c0_11 = arith.constant 0 : index
      %c0_12 = arith.constant 0 : index
      %c0_13 = arith.constant 0 : index
      %16 = vector.load %arg4[%c0_11, %c0_12, %c0_13] : memref<1x8x128xf32, #tpu.memory_space<vmem>>, vector<1x8x128xf32>
      %17 = vector.shape_cast %16 : vector<1x8x128xf32> to vector<8x128xf32>
      %18 = vector.shape_cast %15 : vector<8x128xf32> to vector<1x8x128xf32>
      tpu.vector_store %arg4[%c0_11, %c0_12, %c0_13], %18 {strides = array<i32>} : memref<1x8x128xf32, #tpu.memory_space<vmem>>, vector<1x8x128xf32>,
    } else {
    }
    %c0 = arith.constant 0 : index
    %c0_1 = arith.constant 0 : index
    %3 = vector.load %arg2[%c0, %c0_1] : memref<16x128xf32, #tpu.memory_space<vmem>>, vector<16x128xf32>
    %c0_2 = arith.constant 0 : index
    %c0_3 = arith.constant 0 : index
    %4 = vector.load %arg3[%c0_2, %c0_3] : memref<16x128xf32, #tpu.memory_space<vmem>>, vector<16x128xf32>
    %5 = arith.subf %3, %4 : vector<16x128xf32>
    %6 = arith.mulf %5, %5 : vector<16x128xf32>
    %c0_4 = arith.constant 0 : index
    %c0_5 = arith.constant 0 : index
    %c0_6 = arith.constant 0 : index
    %7 = vector.load %arg4[%c0_4, %c0_5, %c0_6] : memref<1x8x128xf32, #tpu.memory_space<vmem>>, vector<1x8x128xf32>
    %8 = vector.shape_cast %7 : vector<1x8x128xf32> to vector<8x128xf32>
    %9 = vector.shape_cast %6 : vector<16x128xf32> to vector<2x8x128xf32>
    %cst = arith.constant dense<0.000000e+00> : vector<8x128xf32>
    %10 = vector.multi_reduction <add>, %9, %cst [0] : vector<2x8x128xf32> to vector<8x128xf32>
    %11 = arith.addf %8, %10 : vector<8x128xf32>
    %c0_7 = arith.constant 0 : index
    %c0_8 = arith.constant 0 : index
    %c0_9 = arith.constant 0 : index
    %12 = vector.load %arg4[%c0_7, %c0_8, %c0_9] : memref<1x8x128xf32, #tpu.memory_space<vmem>>, vector<1x8x128xf32>
    %13 = vector.shape_cast %12 : vector<1x8x128xf32> to vector<8x128xf32>
    %14 = vector.shape_cast %11 : vector<8x128xf32> to vector<1x8x128xf32>
    tpu.vector_store %arg4[%c0_7, %c0_8, %c0_9], %14 {strides = array<i32>} : memref<1x8x128xf32, #tpu.memory_space<vmem>>, vector<1x8x128xf32>,
    return
  }
  func.func @transform_0(%arg0: i32, %arg1: i32) -> (i32, i32) {
    %c1_i32 = arith.constant 1 : i32
    %0 = arith.muli %arg0, %c1_i32 : i32
    %1 = arith.addi %0, %arg1 : i32
    %c0_i32 = arith.constant 0 : i32
    %2 = arith.minsi %1, %c0_i32 : i32
    %c0_i32_0 = arith.constant 0 : i32
    %c0_i32_1 = arith.constant 0 : i32
    return %2, %c0_i32_0 : i32, i32
  }
  func.func @transform_1(%arg0: i32, %arg1: i32) -> (i32, i32) {
    %c1_i32 = arith.constant 1 : i32
    %0 = arith.muli %arg0, %c1_i32 : i32
    %1 = arith.addi %0, %arg1 : i32
    %c0_i32 = arith.constant 0 : i32
    %2 = arith.minsi %1, %c0_i32 : i32
    %c0_i32_0 = arith.constant 0 : i32
    %c0_i32_1 = arith.constant 0 : i32
    return %2, %c0_i32_0 : i32, i32
  }
  func.func @transform_2(%arg0: i32, %arg1: i32) -> (i32, i32, i32) {
    %c0_i32 = arith.constant 0 : i32
    %c0_i32_0 = arith.constant 0 : i32
    %c0_i32_1 = arith.constant 0 : i32
    return %arg0, %c0_i32, %c0_i32_0 : i32, i32, i32
  }
}

</mosaic_0001>

<llo_original>
// kernel: tpu_custom_call.1
$region0: #{tpu_custom_call.1}
  #allocation0 [shape = 'u32[]', space=smem, size = 0x4, offset = 0x4, fixed_abs, tag = 'smem constant byte address 0x4 - core index']
  #allocation1 [shape = 'u32[144,128]{1,0:T(1,128)}', space=vmem, size = 0x12000, scoped, tag = 'internal scratch']
  %s0 = inlined_call_operand.hbm [shape: f32[16,128], index: 0, kind: input, shape index: {}]
  %s1 = inlined_call_operand.hbm [shape: f32[16,128], index: 1, kind: input, shape index: {}]
  %s2 = inlined_call_operand.hbm [shape: f32[1,8,128], index: 2, kind: output, shape index: {}]
  %s3 = sld [smem:[#allocation0]]
  $region30: #{tpu_custom_call.1} parent=0
    _
  %s5 = ssub.s32 1, %s3
  %s6 = scalar_select 0, %s5, %s3
  $region1: #{tpu_custom_call.1} parent=0
    #allocation2 [shape = 'u8[8192]{0}', space=vmem, size = 0x2000, scoped, tag = 'input window, operand 0, single buffered']
    #allocation3 [shape = 's32[1]{0}', space=sflag, size = 0x4, scoped, tag = 'scoped memory for tpu_custom_call.1']
    #allocation4 [shape = 's32[1]{0}', space=sflag, size = 0x4, scoped, tag = 'scoped memory for tpu_custom_call.1']
    #allocation5 [shape = 'u8[8192]{0}', space=vmem, size = 0x2000, scoped, tag = 'input window, operand 1, single buffered']
    #allocation6 [shape = 's32[1]{0}', space=sflag, size = 0x4, scoped, tag = 'scoped memory for tpu_custom_call.1']
    #allocation7 [shape = 'u8[4096]{0}', space=vmem, size = 0x1000, scoped, tag = 'output window, operand 0, single buffered']
    %7 = vsyncpa [#allocation3], 0
    %8 = vsyncpa [#allocation6], 0
    %9 = vsyncpa [#allocation4], 0
    // Predicated region
    $region2: #{tpu_custom_call.1} parent=1 // pred_check
      _
    $region3: #{tpu_custom_call.1} parent=1 // pred_check_branch
      %11 = sbr.rel (0) target = $region5
    $region4: #{tpu_custom_call.1} parent=1 // pred_region
      %s12 = sadd.s32 0, 0
      %p13 = scmp.lt.s32.totalorder %s12, 0
      %s14 = scalar_select %p13, %s12, 0
      %s15 = smul.u32 2, %s14
      %s17 = ssub.s32 256, 256
      %18 = vsyncadd [#allocation3], %s17
      %s19 = smul.addr %s15, 128
      %s20 = scalar_lea.hbm %s0, %s19
      %s21 = sshll.u32 [#allocation2], 4
      %s22 = int_to_ptr.vmem [resolvable:$true] %s21
      %27 = dma.hbm_to_vmem [thread:$0]  %s20, 256, %s22, [#allocation3], 128, 128, 8
    $region5: #{tpu_custom_call.1} parent=1 // pred_fallthru
      _
    // Predicated region
    $region6: #{tpu_custom_call.1} parent=1 // pred_check
      _
    $region7: #{tpu_custom_call.1} parent=1 // pred_check_branch
      %29 = sbr.rel (0) target = $region9
    $region8: #{tpu_custom_call.1} parent=1 // pred_region
      %s30 = sadd.s32 0, 0
      %p31 = scmp.lt.s32.totalorder %s30, 0
      %s32 = scalar_select %p31, %s30, 0
      %s33 = smul.u32 2, %s32
      %s35 = ssub.s32 256, 256
      %36 = vsyncadd [#allocation6], %s35
      %s37 = smul.addr %s33, 128
      %s38 = scalar_lea.hbm %s1, %s37
      %s39 = sshll.u32 [#allocation5], 4
      %s40 = int_to_ptr.vmem [resolvable:$true] %s39
      %45 = dma.hbm_to_vmem [thread:$0]  %s38, 256, %s40, [#allocation6], 128, 128, 8
    $region9: #{tpu_custom_call.1} parent=1 // pred_fallthru
      _
    // Predicated region
    $region10: #{tpu_custom_call.1} parent=1 // pred_check
      _
    $region11: #{tpu_custom_call.1} parent=1 // pred_check_branch
      %47 = sbr.rel (0) target = $region13
    $region12: #{tpu_custom_call.1} parent=1 // pred_region
      %48 = dma.done [#allocation3], 256
    $region13: #{tpu_custom_call.1} parent=1 // pred_fallthru
      _
    // Predicated region
    $region14: #{tpu_custom_call.1} parent=1 // pred_check
      _
    $region15: #{tpu_custom_call.1} parent=1 // pred_check_branch
      %50 = sbr.rel (0) target = $region17
    $region16: #{tpu_custom_call.1} parent=1 // pred_region
      %51 = dma.done [#allocation6], 256
    $region17: #{tpu_custom_call.1} parent=1 // pred_fallthru
      _
    %s52 = sadd.s32 0, 0
    %p53 = scmp.lt.s32.totalorder %s52, 0
    %s54 = scalar_select %p53, %s52, 0
    %s55 = smul.u32 2, %s54
    %s56 = sadd.s32 0, 0
    %p57 = scmp.lt.s32.totalorder %s56, 0
    %s58 = scalar_select %p57, %s56, 0
    %s59 = smul.u32 2, %s58
    %p60 = scmp.eq.s32.totalorder 0, 0
    // Predicated region
    $region18: #{tpu_custom_call.1} parent=1 // pred_check
      %p61 = pneg %p60
    $region19: #{tpu_custom_call.1} parent=1 // pred_check_branch
      %63 = sbr.rel (%p61) target = $region21
    $region20: #{tpu_custom_call.1} parent=1 // pred_region
      %64 = vst [vmem:[#allocation7] sm:$0xff] 0.0
    $region21: #{tpu_custom_call.1} parent=1 // pred_fallthru
      _
    %v65 = vld [vmem:[#allocation2] sm:$0xff]
    %v66 = vld [vmem:[#allocation2 + $0x8] sm:$0xff]
    %v67 = vld [vmem:[#allocation5] sm:$0xff]
    %v68 = vld [vmem:[#allocation5 + $0x8] sm:$0xff]
    %v69 = vsub.f32 %v65, %v67
    %v70 = vsub.f32 %v66, %v68
    %v71 = vmul.f32 %v69, %v69
    %v72 = vmul.f32 %v70, %v70
    %v73 = vld [vmem:[#allocation7] sm:$0xff]
    %v74 = vadd.f32 %v71, %v72
    %v75 = vadd.f32 %v73, %v74
    %76 = vst [vmem:[#allocation7] sm:$0xff] %v75
    // Predicated region
    $region22: #{tpu_custom_call.1} parent=1 // pred_check
      _
    $region23: #{tpu_custom_call.1} parent=1 // pred_check_branch
      %78 = sbr.rel (0) target = $region25
    $region24: #{tpu_custom_call.1} parent=1 // pred_region
      %s80 = ssub.s32 128, 128
      %81 = vsyncadd [#allocation4], %s80
      %s83 = sshll.u32 [#allocation7], 4
      %s84 = int_to_ptr.vmem [resolvable:$true] %s83
      %86 = dma.vmem_to_hbm [thread:$0]  %s84, 128, %s2, [#allocation4]
    $region25: #{tpu_custom_call.1} parent=1 // pred_fallthru
      _
    // Predicated region
    $region26: #{tpu_custom_call.1} parent=1 // pred_check
      _
    $region27: #{tpu_custom_call.1} parent=1 // pred_check_branch
      %88 = sbr.rel (0) target = $region29
    $region28: #{tpu_custom_call.1} parent=1 // pred_region
      %89 = dma.done [#allocation4], 128
    $region29: #{tpu_custom_call.1} parent=1 // pred_fallthru
      _
    %90 = vsyncpa [#allocation3], 1
    %91 = vsyncpa [#allocation6], 1
    %92 = vsyncpa [#allocation4], 1

</llo_original>
